<compile_context>
chip_gen: v6e
topology: v6e:2x2x1
jax: 0.10.0
libtpu: 0.0.40
codegen_flags: <defaults>
</compile_context>

<pallas_src>
import jax
import jax.numpy as jnp
from jax.experimental import pallas as pl
from jax.experimental.pallas import tpu as pltpu


def gcn_kernel(x_ref, adj_ref, w1_ref, b1_ref, w2_ref, b2_ref, out_ref):
    # Shapes are static at trace time.
    bb, n, d0 = x_ref.shape
    d1 = w1_ref.shape[1]
    d2 = w2_ref.shape[1]

    adj = adj_ref[...]                                    # (N, N), compute dtype

    # ---- layer 1: reassociated as (A @ X) @ W1  (cheaper since D0 < D1) ----
    # Per-batch A @ X_b on the MXU (f32 accumulate), stacked to (BB*N, D0).
    ax = jnp.concatenate(
        [jnp.dot(adj, x_ref[b], preferred_element_type=jnp.float32)
         for b in range(bb)],
        axis=0)                                           # (BB*N, D0) f32
    # One folded weight matmul for the whole (chunk of the) batch.
    h = jnp.dot(ax.astype(w1_ref.dtype), w1_ref[...],
                preferred_element_type=jnp.float32)       # (BB*N, D1) f32
    h = h + b1_ref[...]                                   # bias in f32
    h = jnp.where(h > 0, h, 0.01 * h)                     # leaky_relu in f32

    # ---- layer 2: A @ (H @ W2)  (already the cheaper order since D2 < D1) ----
    hw = jnp.dot(h.astype(w2_ref.dtype), w2_ref[...],
                 preferred_element_type=jnp.float32)      # (BB*N, D2) f32
    for b in range(bb):
        hb = hw[b * n:(b + 1) * n, :].astype(adj.dtype)   # (N, D2)
        ob = jnp.dot(adj, hb, preferred_element_type=jnp.float32) + b2_ref[...]
        ob = jnp.where(ob > 0, ob, 0.01 * ob)             # leaky_relu in f32
        out_ref[b] = ob.astype(out_ref.dtype)


def graph_cnn_forward(x, adj, w1, b1, w2, b2, *,
                      compute_dtype=jnp.bfloat16, batch_chunks=1):
    """Fused 2-layer GCN forward.

    compute_dtype: dtype fed to the MXU (bf16 recommended on v5e/v6e/v7x);
                   accumulation and all pointwise math stay in f32.
    batch_chunks:  number of grid steps over the batch (1 = fully folded;
                   use 2 on v7x when B >= 2 to engage both TensorCores).
    """
    B, N, D0 = x.shape
    D1 = w1.shape[1]
    D2 = w2.shape[1]
    assert B % batch_chunks == 0, "batch_chunks must divide the batch size"
    BB = B // batch_chunks

    out_dtype = x.dtype
    xc = x.astype(compute_dtype)
    adjc = adj.astype(compute_dtype)
    w1c = w1.astype(compute_dtype)
    w2c = w2.astype(compute_dtype)
    b1_2d = b1.reshape(1, D1).astype(jnp.float32)
    b2_2d = b2.reshape(1, D2).astype(jnp.float32)

    args = (xc, adjc, w1c, b1_2d, w2c, b2_2d)
    in_bytes = sum(int(a.size) * a.dtype.itemsize for a in args)
    out_bytes = B * N * D2 * jnp.dtype(out_dtype).itemsize
    cost = pl.CostEstimate(
        flops=2 * B * (N * N * D0 + N * D0 * D1 + N * D1 * D2 + N * N * D2),
        transcendentals=0,
        bytes_accessed=in_bytes + out_bytes)

    return pl.pallas_call(
        gcn_kernel,
        out_shape=jax.ShapeDtypeStruct((B, N, D2), out_dtype),
        grid=(batch_chunks,),
        in_specs=[
            pl.BlockSpec((BB, N, D0), lambda c: (c, 0, 0)),   # x (batch chunk)
            pl.BlockSpec((N, N), lambda c: (0, 0)),           # adj (shared)
            pl.BlockSpec((D0, D1), lambda c: (0, 0)),         # W1
            pl.BlockSpec((1, D1), lambda c: (0, 0)),          # b1 (f32)
            pl.BlockSpec((D1, D2), lambda c: (0, 0)),         # W2
            pl.BlockSpec((1, D2), lambda c: (0, 0)),          # b2 (f32)
        ],
        out_specs=pl.BlockSpec((BB, N, D2), lambda c: (c, 0, 0)),
        compiler_params=pltpu.CompilerParams(
            dimension_semantics=("parallel",)),
        cost_estimate=cost,
    )(*args)


def xavier_uniform(key, shape, gain):
    fan_in, fan_out = shape
    limit = gain * jnp.sqrt(6.0 / (fan_in + fan_out))
    return jax.random.uniform(key, shape, jnp.float32, -limit, limit)


def reference_forward(x, adj, w1, b1, w2, b2):
    def layer(h, w, b):
        return jnp.einsum('ij,bjk->bik', adj,
                          jnp.einsum('bij,jk->bik', h, w)) + b
    h = jax.nn.leaky_relu(layer(x, w1, b1), 0.01)
    h = jax.nn.leaky_relu(layer(h, w2, b2), 0.01)
    return h


if __name__ == "__main__":
    key = jax.random.PRNGKey(0)
    k_x, k_a, k_w1, k_w2 = jax.random.split(key, 4)

    # small shapes: batch=2, nodes=16, layer_dim=[8, 32, 16]
    B, N = 2, 16
    layer_dim = [8, 32, 16]

    gain = float(jnp.sqrt(2.0))  # nn.init.calculate_gain('relu')
    w1 = xavier_uniform(k_w1, (layer_dim[0], layer_dim[1]), gain)
    b1 = jnp.zeros((layer_dim[1],), jnp.float32)
    w2 = xavier_uniform(k_w2, (layer_dim[1], layer_dim[2]), gain)
    b2 = jnp.zeros((layer_dim[2],), jnp.float32)

    x = jax.random.normal(k_x, (B, N, layer_dim[0]), jnp.float32)
    adj = jax.random.uniform(k_a, (N, N), jnp.float32)

    ref = reference_forward(x, adj, w1, b1, w2, b2)

    # 1) Exact-semantics path: f32 end to end, tight tolerance.
    out_f32 = jax.block_until_ready(
        graph_cnn_forward(x, adj, w1, b1, w2, b2, compute_dtype=jnp.float32))
    assert out_f32.shape == (B, N, layer_dim[2])
    assert jnp.allclose(out_f32, ref, atol=1e-4, rtol=1e-4)

    # 2) Fast path: bf16 MXU operands, f32 accumulation / pointwise math.
    out = jax.block_until_ready(graph_cnn_forward(x, adj, w1, b1, w2, b2))
    assert out.shape == (B, N, layer_dim[2])
    assert jnp.allclose(out, ref, atol=1e-1, rtol=5e-2)

    print("KERNEL_OK")
</pallas_src>

<mosaic_0001>
module attributes {stable_mosaic.version = 11 : i64} {
  func.func @gcn_kernel(%arg0: i32, %arg1: memref<2x16x8xf32, #tpu.memory_space<vmem>>, %arg2: memref<16x16xf32, #tpu.memory_space<vmem>>, %arg3: memref<8x32xf32, #tpu.memory_space<vmem>>, %arg4: memref<1x32xf32, #tpu.memory_space<vmem>>, %arg5: memref<32x16xf32, #tpu.memory_space<vmem>>, %arg6: memref<1x16xf32, #tpu.memory_space<vmem>>, %arg7: memref<2x16x16xf32, #tpu.memory_space<vmem>>) attributes {dimension_semantics = [#tpu.dimension_semantics<parallel>], iteration_bounds = array<i64: 1>, scalar_prefetch = 0 : i64, scratch_operands = 0 : i64, tpu.core_type = #tpu.core_type<tc>, window_params = [{transform_indices = @transform_0, window_bounds = array<i64: 2, 16, 8>}, {pipeline_mode = #tpu.pipeline_mode<synchronous>, transform_indices = @transform_1, window_bounds = array<i64: 16, 16>}, {pipeline_mode = #tpu.pipeline_mode<synchronous>, transform_indices = @transform_2, window_bounds = array<i64: 8, 32>}, {pipeline_mode = #tpu.pipeline_mode<synchronous>, transform_indices = @transform_3, window_bounds = array<i64: 1, 32>}, {pipeline_mode = #tpu.pipeline_mode<synchronous>, transform_indices = @transform_4, window_bounds = array<i64: 32, 16>}, {pipeline_mode = #tpu.pipeline_mode<synchronous>, transform_indices = @transform_5, window_bounds = array<i64: 1, 16>}, {transform_indices = @transform_6, window_bounds = array<i64: 2, 16, 16>}]} {
    %c0 = arith.constant 0 : index
    %c0_0 = arith.constant 0 : index
    %0 = vector.load %arg2[%c0, %c0_0] : memref<16x16xf32, #tpu.memory_space<vmem>>, vector<16x16xf32>
    %c0_1 = arith.constant 0 : index
    %c0_2 = arith.constant 0 : index
    %c0_3 = arith.constant 0 : index
    %1 = vector.load %arg1[%c0_1, %c0_2, %c0_3] : memref<2x16x8xf32, #tpu.memory_space<vmem>>, vector<1x16x8xf32>
    %2 = vector.shape_cast %1 : vector<1x16x8xf32> to vector<16x8xf32>
    %cst = arith.constant dense<0.000000e+00> : vector<16x8xf32>
    %3 = tpu.matmul %0, %2, %cst {dimension_numbers = #tpu.dot_dimension_numbers<[1], [0], [0], [1], [0, 0, 1, 1], [], []>} : vector<16x16xf32>, vector<16x8xf32>, vector<16x8xf32> -> vector<16x8xf32>
    %c1 = arith.constant 1 : index
    %c0_4 = arith.constant 0 : index
    %c0_5 = arith.constant 0 : index
    %4 = vector.load %arg1[%c1, %c0_4, %c0_5] : memref<2x16x8xf32, #tpu.memory_space<vmem>>, vector<1x16x8xf32>
    %5 = vector.shape_cast %4 : vector<1x16x8xf32> to vector<16x8xf32>
    %cst_6 = arith.constant dense<0.000000e+00> : vector<16x8xf32>
    %6 = tpu.matmul %0, %5, %cst_6 {dimension_numbers = #tpu.dot_dimension_numbers<[1], [0], [0], [1], [0, 0, 1, 1], [], []>} : vector<16x16xf32>, vector<16x8xf32>, vector<16x8xf32> -> vector<16x8xf32>
    %7 = tpu.concatenate %3, %6 in 0 : vector<16x8xf32>, vector<16x8xf32> -> vector<32x8xf32>
    %c0_7 = arith.constant 0 : index
    %c0_8 = arith.constant 0 : index
    %8 = vector.load %arg3[%c0_7, %c0_8] : memref<8x32xf32, #tpu.memory_space<vmem>>, vector<8x32xf32>
    %cst_9 = arith.constant dense<0.000000e+00> : vector<32x32xf32>
    %9 = tpu.matmul %7, %8, %cst_9 {dimension_numbers = #tpu.dot_dimension_numbers<[1], [0], [0], [1], [0, 0, 1, 1], [], []>} : vector<32x8xf32>, vector<8x32xf32>, vector<32x32xf32> -> vector<32x32xf32>
    %c0_10 = arith.constant 0 : index
    %c0_11 = arith.constant 0 : index
    %10 = vector.load %arg4[%c0_10, %c0_11] : memref<1x32xf32, #tpu.memory_space<vmem>>, vector<1x32xf32>
    %11 = vector.broadcast %10 : vector<1x32xf32> to vector<32x32xf32>
    %12 = arith.addf %9, %11 : vector<32x32xf32>
    %cst_12 = arith.constant 0.000000e+00 : f32
    %13 = vector.broadcast %cst_12 : f32 to vector<32x32xf32>
    %14 = arith.cmpf ogt, %12, %13 : vector<32x32xf32>
    %cst_13 = arith.constant 0.00999999977 : f32
    %15 = vector.broadcast %cst_13 : f32 to vector<32x32xf32>
    %16 = arith.mulf %15, %12 : vector<32x32xf32>
    %17 = arith.select %14, %12, %16 : vector<32x32xi1>, vector<32x32xf32>
    %c0_14 = arith.constant 0 : index
    %c0_15 = arith.constant 0 : index
    %18 = vector.load %arg5[%c0_14, %c0_15] : memref<32x16xf32, #tpu.memory_space<vmem>>, vector<32x16xf32>
    %cst_16 = arith.constant dense<0.000000e+00> : vector<32x16xf32>
    %19 = tpu.matmul %17, %18, %cst_16 {dimension_numbers = #tpu.dot_dimension_numbers<[1], [0], [0], [1], [0, 0, 1, 1], [], []>} : vector<32x32xf32>, vector<32x16xf32>, vector<32x16xf32> -> vector<32x16xf32>
    %20 = vector.extract_strided_slice %19 {offsets = [0, 0], sizes = [16, 16], strides = [1, 1]} : vector<32x16xf32> to vector<16x16xf32>
    %cst_17 = arith.constant dense<0.000000e+00> : vector<16x16xf32>
    %21 = tpu.matmul %0, %20, %cst_17 {dimension_numbers = #tpu.dot_dimension_numbers<[1], [0], [0], [1], [0, 0, 1, 1], [], []>} : vector<16x16xf32>, vector<16x16xf32>, vector<16x16xf32> -> vector<16x16xf32>
    %c0_18 = arith.constant 0 : index
    %c0_19 = arith.constant 0 : index
    %22 = vector.load %arg6[%c0_18, %c0_19] : memref<1x16xf32, #tpu.memory_space<vmem>>, vector<1x16xf32>
    %23 = vector.broadcast %22 : vector<1x16xf32> to vector<16x16xf32>
    %24 = arith.addf %21, %23 : vector<16x16xf32>
    %cst_20 = arith.constant 0.000000e+00 : f32
    %25 = vector.broadcast %cst_20 : f32 to vector<16x16xf32>
    %26 = arith.cmpf ogt, %24, %25 : vector<16x16xf32>
    %cst_21 = arith.constant 0.00999999977 : f32
    %27 = vector.broadcast %cst_21 : f32 to vector<16x16xf32>
    %28 = arith.mulf %27, %24 : vector<16x16xf32>
    %29 = arith.select %26, %24, %28 : vector<16x16xi1>, vector<16x16xf32>
    %c0_22 = arith.constant 0 : index
    %c0_23 = arith.constant 0 : index
    %c0_24 = arith.constant 0 : index
    %30 = vector.load %arg7[%c0_22, %c0_23, %c0_24] : memref<2x16x16xf32, #tpu.memory_space<vmem>>, vector<1x16x16xf32>
    %31 = vector.shape_cast %30 : vector<1x16x16xf32> to vector<16x16xf32>
    %32 = vector.shape_cast %29 : vector<16x16xf32> to vector<1x16x16xf32>
    tpu.vector_store %arg7[%c0_22, %c0_23, %c0_24], %32 {strides = array<i32>} : memref<2x16x16xf32, #tpu.memory_space<vmem>>, vector<1x16x16xf32>,
    %33 = vector.extract_strided_slice %19 {offsets = [16, 0], sizes = [16, 16], strides = [1, 1]} : vector<32x16xf32> to vector<16x16xf32>
    %cst_25 = arith.constant dense<0.000000e+00> : vector<16x16xf32>
    %34 = tpu.matmul %0, %33, %cst_25 {dimension_numbers = #tpu.dot_dimension_numbers<[1], [0], [0], [1], [0, 0, 1, 1], [], []>} : vector<16x16xf32>, vector<16x16xf32>, vector<16x16xf32> -> vector<16x16xf32>
    %c0_26 = arith.constant 0 : index
    %c0_27 = arith.constant 0 : index
    %35 = vector.load %arg6[%c0_26, %c0_27] : memref<1x16xf32, #tpu.memory_space<vmem>>, vector<1x16xf32>
    %36 = vector.broadcast %35 : vector<1x16xf32> to vector<16x16xf32>
    %37 = arith.addf %34, %36 : vector<16x16xf32>
    %cst_28 = arith.constant 0.000000e+00 : f32
    %38 = vector.broadcast %cst_28 : f32 to vector<16x16xf32>
    %39 = arith.cmpf ogt, %37, %38 : vector<16x16xf32>
    %cst_29 = arith.constant 0.00999999977 : f32
    %40 = vector.broadcast %cst_29 : f32 to vector<16x16xf32>
    %41 = arith.mulf %40, %37 : vector<16x16xf32>
    %42 = arith.select %39, %37, %41 : vector<16x16xi1>, vector<16x16xf32>
    %c1_30 = arith.constant 1 : index
    %c0_31 = arith.constant 0 : index
    %c0_32 = arith.constant 0 : index
    %43 = vector.load %arg7[%c1_30, %c0_31, %c0_32] : memref<2x16x16xf32, #tpu.memory_space<vmem>>, vector<1x16x16xf32>
    %44 = vector.shape_cast %43 : vector<1x16x16xf32> to vector<16x16xf32>
    %45 = vector.shape_cast %42 : vector<16x16xf32> to vector<1x16x16xf32>
    tpu.vector_store %arg7[%c1_30, %c0_31, %c0_32], %45 {strides = array<i32>} : memref<2x16x16xf32, #tpu.memory_space<vmem>>, vector<1x16x16xf32>,
    return
  }
  func.func @transform_0(%arg0: i32) -> (i32, i32, i32) {
    %c0_i32 = arith.constant 0 : i32
    %c0_i32_0 = arith.constant 0 : i32
    %c0_i32_1 = arith.constant 0 : i32
    return %arg0, %c0_i32, %c0_i32_0 : i32, i32, i32
  }
  func.func @transform_1(%arg0: i32) -> (i32, i32) {
    %c0_i32 = arith.constant 0 : i32
    %c0_i32_0 = arith.constant 0 : i32
    %c0_i32_1 = arith.constant 0 : i32
    return %c0_i32, %c0_i32_0 : i32, i32
  }
  func.func @transform_2(%arg0: i32) -> (i32, i32) {
    %c0_i32 = arith.constant 0 : i32
    %c0_i32_0 = arith.constant 0 : i32
    %c0_i32_1 = arith.constant 0 : i32
    return %c0_i32, %c0_i32_0 : i32, i32
  }
  func.func @transform_3(%arg0: i32) -> (i32, i32) {
    %c0_i32 = arith.constant 0 : i32
    %c0_i32_0 = arith.constant 0 : i32
    %c0_i32_1 = arith.constant 0 : i32
    return %c0_i32, %c0_i32_0 : i32, i32
  }
  func.func @transform_4(%arg0: i32) -> (i32, i32) {
    %c0_i32 = arith.constant 0 : i32
    %c0_i32_0 = arith.constant 0 : i32
    %c0_i32_1 = arith.constant 0 : i32
    return %c0_i32, %c0_i32_0 : i32, i32
  }
  func.func @transform_5(%arg0: i32) -> (i32, i32) {
    %c0_i32 = arith.constant 0 : i32
    %c0_i32_0 = arith.constant 0 : i32
    %c0_i32_1 = arith.constant 0 : i32
    return %c0_i32, %c0_i32_0 : i32, i32
  }
  func.func @transform_6(%arg0: i32) -> (i32, i32, i32) {
    %c0_i32 = arith.constant 0 : i32
    %c0_i32_0 = arith.constant 0 : i32
    %c0_i32_1 = arith.constant 0 : i32
    return %arg0, %c0_i32, %c0_i32_0 : i32, i32, i32
  }
}

</mosaic_0001>

<llo_original>
// kernel: tpu_custom_call.1
$region0: #{tpu_custom_call.1}
  #allocation0 [shape = 'u32[]', space=smem, size = 0x4, offset = 0x4, fixed_abs, tag = 'smem constant byte address 0x4 - core index']
  #allocation1 [shape = 'u32[144,128]{1,0:T(1,128)}', space=vmem, size = 0x12000, scoped, tag = 'internal scratch']
  %s0 = inlined_call_operand.vmem [shape: f32[2,16,8], index: 0, kind: input, shape index: {}]
  %s1 = inlined_call_operand.vmem [shape: f32[16,16], index: 1, kind: input, shape index: {}]
  %s2 = inlined_call_operand.vmem [shape: f32[8,32], index: 2, kind: input, shape index: {}]
  %s3 = inlined_call_operand.vmem [shape: f32[1,32], index: 3, kind: input, shape index: {}]
  %s4 = inlined_call_operand.vmem [shape: f32[32,16], index: 4, kind: input, shape index: {}]
  %s5 = inlined_call_operand.vmem [shape: f32[1,16], index: 5, kind: input, shape index: {}]
  %s6 = inlined_call_operand.hbm [shape: f32[2,16,16], index: 6, kind: output, shape index: {}]
  %s7 = sld [smem:[#allocation0]]
  $region34: #{tpu_custom_call.1} parent=0
    _
  %s9 = ssub.s32 1, %s7
  %s10 = scalar_select 0, %s9, %s7
  $region1: #{tpu_custom_call.1} parent=0
    #allocation2 [shape = 'u8[16384]{0}', space=vmem, size = 0x4000, scoped, tag = 'output window, operand 0, single buffered']
    #allocation3 [shape = 's32[1]{0}', space=sflag, size = 0x4, scoped, tag = 'scoped memory for tpu_custom_call.1']
    %11 = vsyncpa [#allocation3], 0
    // Predicated region
    $region2: #{tpu_custom_call.1} parent=1 // pred_check
      _
    $region3: #{tpu_custom_call.1} parent=1 // pred_check_branch
      %13 = sbr.rel (0) target = $region5
    $region4: #{tpu_custom_call.1} parent=1 // pred_region
      _
    $region5: #{tpu_custom_call.1} parent=1 // pred_fallthru
      _
    // Predicated region
    $region6: #{tpu_custom_call.1} parent=1 // pred_check
      _
    $region7: #{tpu_custom_call.1} parent=1 // pred_check_branch
      %15 = sbr.rel (0) target = $region9
    $region8: #{tpu_custom_call.1} parent=1 // pred_region
      _
    $region9: #{tpu_custom_call.1} parent=1 // pred_fallthru
      _
    // Predicated region
    $region10: #{tpu_custom_call.1} parent=1 // pred_check
      _
    $region11: #{tpu_custom_call.1} parent=1 // pred_check_branch
      %17 = sbr.rel (0) target = $region13
    $region12: #{tpu_custom_call.1} parent=1 // pred_region
      _
    $region13: #{tpu_custom_call.1} parent=1 // pred_fallthru
      _
    // Predicated region
    $region14: #{tpu_custom_call.1} parent=1 // pred_check
      _
    $region15: #{tpu_custom_call.1} parent=1 // pred_check_branch
      %19 = sbr.rel (0) target = $region17
    $region16: #{tpu_custom_call.1} parent=1 // pred_region
      _
    $region17: #{tpu_custom_call.1} parent=1 // pred_fallthru
      _
    // Predicated region
    $region18: #{tpu_custom_call.1} parent=1 // pred_check
      _
    $region19: #{tpu_custom_call.1} parent=1 // pred_check_branch
      %21 = sbr.rel (0) target = $region21
    $region20: #{tpu_custom_call.1} parent=1 // pred_region
      _
    $region21: #{tpu_custom_call.1} parent=1 // pred_fallthru
      _
    // Predicated region
    $region22: #{tpu_custom_call.1} parent=1 // pred_check
      _
    $region23: #{tpu_custom_call.1} parent=1 // pred_check_branch
      %23 = sbr.rel (0) target = $region25
    $region24: #{tpu_custom_call.1} parent=1 // pred_region
      _
    $region25: #{tpu_custom_call.1} parent=1 // pred_fallthru
      _
    %v24 = vld [vmem:[%s1] sm:$0xff]
    %v25 = vld [vmem:[%s1 + $0x8] sm:$0xff]
    %v26 = vld [vmem:[%s0] sm:$0xff]
    %v27 = vld [vmem:[%s0 + $0x8] sm:$0xff]
    %vm28 = vcmask 130048
    %v30 = vsel %vm28, %v24, 0
    %v33 = vsel %vm28, %v25, 0
    %35 = vmatprep.subr.mxu0 0.0
    %36 = vmatpush1.msra.mxu0 0.0
    %37 = vmatprep.subr.mxu0 0.0
    %38 = vmatpush1.msra.mxu0 0.0
    %39 = vmatprep.subr.mxu0 0.0
    %40 = vmatpush1.msra.mxu0 0.0
    %41 = vmatprep.subr.mxu0 0.0
    %42 = vmatpush1.msra.mxu0 0.0
    %43 = vmatprep.subr.mxu0 0.0
    %44 = vmatpush1.msra.mxu0 0.0
    %45 = vmatprep.subr.mxu0 0.0
    %46 = vmatpush1.msra.mxu0 0.0
    %47 = vmatprep.subr.mxu0 0.0
    %48 = vmatpush1.msra.mxu0 0.0
    %49 = vmatprep.subr.mxu0 0.0
    %50 = vmatpush1.msra.mxu0 0.0
    %51 = vmatprep.subr.mxu0 0.0
    %52 = vmatpush1.msra.mxu0 0.0
    %53 = vmatprep.subr.mxu0 0.0
    %54 = vmatpush1.msra.mxu0 0.0
    %55 = vmatprep.subr.mxu0 0.0
    %56 = vmatpush1.msra.mxu0 0.0
    %57 = vmatprep.subr.mxu0 0.0
    %58 = vmatpush1.msra.mxu0 0.0
    %59 = vmatprep.subr.mxu0 0.0
    %60 = vmatpush1.msra.mxu0 0.0
    %61 = vmatprep.subr.mxu0 0.0
    %62 = vmatpush1.msra.mxu0 0.0
    %63 = vmatprep.subr.mxu0 0.0
    %64 = vmatpush1.msra.mxu0 %v27
    %65 = vmatprep.subr.mxu0 0.0
    %66 = vmatpush1.msra.mxu0 %v26
    %67 = vmatprep.subr.mxu0 0.0
    %68 = vmatpush2.msra.mxu0 0.0
    %69 = vmatprep.subr.mxu0 0.0
    %70 = vmatpush2.msra.mxu0 0.0
    %71 = vmatprep.subr.mxu0 0.0
    %72 = vmatpush2.msra.mxu0 0.0
    %73 = vmatprep.subr.mxu0 0.0
    %74 = vmatpush2.msra.mxu0 0.0
    %75 = vmatprep.subr.mxu0 0.0
    %76 = vmatpush2.msra.mxu0 0.0
    %77 = vmatprep.subr.mxu0 0.0
    %78 = vmatpush2.msra.mxu0 0.0
    %79 = vmatprep.subr.mxu0 0.0
    %80 = vmatpush2.msra.mxu0 0.0
    %81 = vmatprep.subr.mxu0 0.0
    %82 = vmatpush2.msra.mxu0 0.0
    %83 = vmatprep.subr.mxu0 0.0
    %84 = vmatpush2.msra.mxu0 0.0
    %85 = vmatprep.subr.mxu0 0.0
    %86 = vmatpush2.msra.mxu0 0.0
    %87 = vmatprep.subr.mxu0 0.0
    %88 = vmatpush2.msra.mxu0 0.0
    %89 = vmatprep.subr.mxu0 0.0
    %90 = vmatpush2.msra.mxu0 0.0
    %91 = vmatprep.subr.mxu0 0.0
    %92 = vmatpush2.msra.mxu0 0.0
    %93 = vmatprep.subr.mxu0 0.0
    %94 = vmatpush2.msra.mxu0 0.0
    %95 = vmatprep.subr.mxu0 0.0
    %96 = vmatpush2.msra.mxu0 0.0
    %97 = vmatprep.subr.mxu0 0.0
    %98 = vmatpush2.msra.mxu0 0.0
    %99 = vmatprep.mubr.f32.mxu0 0.0
    %100 = vmatmul.mubr.f32.gmra.mxu0 %v30
    %v101 = vpop.f32.mrf.mxu0
    %v102 = vadd.f32 0.0, %v101
    %v103 = vpop.f32.mrf.mxu0
    %104 = vmatprep.mubr.f32.mxu0 0.0
    %105 = vmatmul.mubr.f32.gmra.mxu0 %v33
    %v106 = vpop.f32.mrf.mxu0
    %v107 = vadd.f32 0.0, %v106
    %v108 = vpop.f32.mrf.mxu0
    %109 = vdwg.mxu0
    %s110 = scalar_lea.vmem %s0, 16
    %v111 = vld [vmem:[%s110] sm:$0xff]
    %v112 = vld [vmem:[%s110 + $0x8] sm:$0xff]
    %113 = vmatprep.subr.mxu0 0.0
    %114 = vmatpush1.msra.mxu0 0.0
    %115 = vmatprep.subr.mxu0 0.0
    %116 = vmatpush1.msra.mxu0 0.0
    %117 = vmatprep.subr.mxu0 0.0
    %118 = vmatpush1.msra.mxu0 0.0
    %119 = vmatprep.subr.mxu0 0.0
    %120 = vmatpush1.msra.mxu0 0.0
    %121 = vmatprep.subr.mxu0 0.0
    %122 = vmatpush1.msra.mxu0 0.0
    %123 = vmatprep.subr.mxu0 0.0
    %124 = vmatpush1.msra.mxu0 0.0
    %125 = vmatprep.subr.mxu0 0.0
    %126 = vmatpush1.msra.mxu0 0.0
    %127 = vmatprep.subr.mxu0 0.0
    %128 = vmatpush1.msra.mxu0 0.0
    %129 = vmatprep.subr.mxu0 0.0
    %130 = vmatpush1.msra.mxu0 0.0
    %131 = vmatprep.subr.mxu0 0.0
    %132 = vmatpush1.msra.mxu0 0.0
    %133 = vmatprep.subr.mxu0 0.0
    %134 = vmatpush1.msra.mxu0 0.0
    %135 = vmatprep.subr.mxu0 0.0
    %136 = vmatpush1.msra.mxu0 0.0
    %137 = vmatprep.subr.mxu0 0.0
    %138 = vmatpush1.msra.mxu0 0.0
    %139 = vmatprep.subr.mxu0 0.0
    %140 = vmatpush1.msra.mxu0 0.0
    %141 = vmatprep.subr.mxu0 0.0
    %142 = vmatpush1.msra.mxu0 %v112
    %143 = vmatprep.subr.mxu0 0.0
    %144 = vmatpush1.msra.mxu0 %v111
    %145 = vmatprep.subr.mxu0 0.0
    %146 = vmatpush2.msra.mxu0 0.0
    %147 = vmatprep.subr.mxu0 0.0
    %148 = vmatpush2.msra.mxu0 0.0
    %149 = vmatprep.subr.mxu0 0.0
    %150 = vmatpush2.msra.mxu0 0.0
    %151 = vmatprep.subr.mxu0 0.0
    %152 = vmatpush2.msra.mxu0 0.0
    %153 = vmatprep.subr.mxu0 0.0
    %154 = vmatpush2.msra.mxu0 0.0
    %155 = vmatprep.subr.mxu0 0.0
    %156 = vmatpush2.msra.mxu0 0.0
    %157 = vmatprep.subr.mxu0 0.0
    %158 = vmatpush2.msra.mxu0 0.0
    %159 = vmatprep.subr.mxu0 0.0
    %160 = vmatpush2.msra.mxu0 0.0
    %161 = vmatprep.subr.mxu0 0.0
    %162 = vmatpush2.msra.mxu0 0.0
    %163 = vmatprep.subr.mxu0 0.0
    %164 = vmatpush2.msra.mxu0 0.0
    %165 = vmatprep.subr.mxu0 0.0
    %166 = vmatpush2.msra.mxu0 0.0
    %167 = vmatprep.subr.mxu0 0.0
    %168 = vmatpush2.msra.mxu0 0.0
    %169 = vmatprep.subr.mxu0 0.0
    %170 = vmatpush2.msra.mxu0 0.0
    %171 = vmatprep.subr.mxu0 0.0
    %172 = vmatpush2.msra.mxu0 0.0
    %173 = vmatprep.subr.mxu0 0.0
    %174 = vmatpush2.msra.mxu0 0.0
    %175 = vmatprep.subr.mxu0 0.0
    %176 = vmatpush2.msra.mxu0 0.0
    %177 = vmatprep.mubr.f32.mxu0 0.0
    %178 = vmatmul.mubr.f32.gmra.mxu0 %v30
    %v179 = vpop.f32.mrf.mxu0
    %v180 = vadd.f32 0.0, %v179
    %v181 = vpop.f32.mrf.mxu0
    %182 = vmatprep.mubr.f32.mxu0 0.0
    %183 = vmatmul.mubr.f32.gmra.mxu0 %v33
    %v184 = vpop.f32.mrf.mxu0
    %v185 = vadd.f32 0.0, %v184
    %v186 = vpop.f32.mrf.mxu0
    %187 = vdwg.mxu0
    %v188 = vld [vmem:[%s2] sm:$0xff]
    %v189 = vld [vmem:[%s3] sm:$0x1]
    %v191 = vlaneseq
    %v192 = vshrl.u32 %v191, 7
    %v193 = vsub.s32 0, %v192
    %v194 = vrot.slane %v189, %v193
    %vm196 = vcmask 64512
    %v198 = vsel %vm196, %v102, 0
    %v201 = vsel %vm196, %v107, 0
    %v204 = vsel %vm196, %v180, 0
    %v207 = vsel %vm196, %v185, 0
    %209 = vmatprep.subr.mxu0 0.0
    %210 = vmatpush1.msra.mxu0 0.0
    %211 = vmatprep.subr.mxu0 0.0
    %212 = vmatpush1.msra.mxu0 0.0
    %213 = vmatprep.subr.mxu0 0.0
    %214 = vmatpush1.msra.mxu0 0.0
    %215 = vmatprep.subr.mxu0 0.0
    %216 = vmatpush1.msra.mxu0 0.0
    %217 = vmatprep.subr.mxu0 0.0
    %218 = vmatpush1.msra.mxu0 0.0
    %219 = vmatprep.subr.mxu0 0.0
    %220 = vmatpush1.msra.mxu0 0.0
    %221 = vmatprep.subr.mxu0 0.0
    %222 = vmatpush1.msra.mxu0 0.0
    %223 = vmatprep.subr.mxu0 0.0
    %224 = vmatpush1.msra.mxu0 0.0
    %225 = vmatprep.subr.mxu0 0.0
    %226 = vmatpush1.msra.mxu0 0.0
    %227 = vmatprep.subr.mxu0 0.0
    %228 = vmatpush1.msra.mxu0 0.0
    %229 = vmatprep.subr.mxu0 0.0
    %230 = vmatpush1.msra.mxu0 0.0
    %231 = vmatprep.subr.mxu0 0.0
    %232 = vmatpush1.msra.mxu0 0.0
    %233 = vmatprep.subr.mxu0 0.0
    %234 = vmatpush1.msra.mxu0 0.0
    %235 = vmatprep.subr.mxu0 0.0
    %236 = vmatpush1.msra.mxu0 0.0
    %237 = vmatprep.subr.mxu0 0.0
    %238 = vmatpush1.msra.mxu0 0.0
    %239 = vmatprep.subr.mxu0 0.0
    %240 = vmatpush1.msra.mxu0 %v188
    %241 = vmatprep.subr.mxu0 0.0
    %242 = vmatpush2.msra.mxu0 0.0
    %243 = vmatprep.subr.mxu0 0.0
    %244 = vmatpush2.msra.mxu0 0.0
    %245 = vmatprep.subr.mxu0 0.0
    %246 = vmatpush2.msra.mxu0 0.0
    %247 = vmatprep.subr.mxu0 0.0
    %248 = vmatpush2.msra.mxu0 0.0
    %249 = vmatprep.subr.mxu0 0.0
    %250 = vmatpush2.msra.mxu0 0.0
    %251 = vmatprep.subr.mxu0 0.0
    %252 = vmatpush2.msra.mxu0 0.0
    %253 = vmatprep.subr.mxu0 0.0
    %254 = vmatpush2.msra.mxu0 0.0
    %255 = vmatprep.subr.mxu0 0.0
    %256 = vmatpush2.msra.mxu0 0.0
    %257 = vmatprep.subr.mxu0 0.0
    %258 = vmatpush2.msra.mxu0 0.0
    %259 = vmatprep.subr.mxu0 0.0
    %260 = vmatpush2.msra.mxu0 0.0
    %261 = vmatprep.subr.mxu0 0.0
    %262 = vmatpush2.msra.mxu0 0.0
    %263 = vmatprep.subr.mxu0 0.0
    %264 = vmatpush2.msra.mxu0 0.0
    %265 = vmatprep.subr.mxu0 0.0
    %266 = vmatpush2.msra.mxu0 0.0
    %267 = vmatprep.subr.mxu0 0.0
    %268 = vmatpush2.msra.mxu0 0.0
    %269 = vmatprep.subr.mxu0 0.0
    %270 = vmatpush2.msra.mxu0 0.0
    %271 = vmatprep.subr.mxu0 0.0
    %272 = vmatpush2.msra.mxu0 0.0
    %273 = vmatprep.mubr.f32.mxu0 0.0
    %274 = vmatmul.mubr.f32.gmra.mxu0 %v198
    %v275 = vpop.f32.mrf.mxu0
    %v276 = vadd.f32 %v194, %v275
    %v277 = vpop.f32.mrf.mxu0
    %278 = vmatprep.mubr.f32.mxu0 0.0
    %279 = vmatmul.mubr.f32.gmra.mxu0 %v201
    %v280 = vpop.f32.mrf.mxu0
    %v281 = vadd.f32 %v194, %v280
    %v282 = vpop.f32.mrf.mxu0
    %283 = vmatprep.mubr.f32.mxu0 0.0
    %284 = vmatmul.mubr.f32.gmra.mxu0 %v204
    %v285 = vpop.f32.mrf.mxu0
    %v286 = vadd.f32 %v194, %v285
    %v287 = vpop.f32.mrf.mxu0
    %288 = vmatprep.mubr.f32.mxu0 0.0
    %289 = vmatmul.mubr.f32.gmra.mxu0 %v207
    %v290 = vpop.f32.mrf.mxu0
    %v291 = vadd.f32 %v194, %v290
    %v292 = vpop.f32.mrf.mxu0
    %293 = vdwg.mxu0
    %vm294 = vcmp.gt.f32.partialorder %v276, 0.0
    %vm295 = vcmp.gt.f32.partialorder %v281, 0.0
    %vm296 = vcmp.gt.f32.partialorder %v286, 0.0
    %vm297 = vcmp.gt.f32.partialorder %v291, 0.0
    %v298 = vmul.f32 %v276, 0.01
    %v299 = vmul.f32 %v281, 0.01
    %v300 = vmul.f32 %v286, 0.01
    %v301 = vmul.f32 %v291, 0.01
    %v302 = vsel %vm294, %v276, %v298
    %v303 = vsel %vm295, %v281, %v299
    %v304 = vsel %vm296, %v286, %v300
    %v305 = vsel %vm297, %v291, %v301
    %v306 = vld [vmem:[%s4] sm:$0xff]
    %v307 = vld [vmem:[%s4 + $0x8] sm:$0xff]
    %v308 = vld [vmem:[%s4 + $0x10] sm:$0xff]
    %v309 = vld [vmem:[%s4 + $0x18] sm:$0xff]
    %vm310 = vcmask 261120
    %v312 = vsel %vm310, %v302, 0
    %v315 = vsel %vm310, %v303, 0
    %v318 = vsel %vm310, %v304, 0
    %v321 = vsel %vm310, %v305, 0
    %323 = vmatprep.subr.mxu0 0.0
    %324 = vmatpush1.msra.mxu0 0.0
    %325 = vmatprep.subr.mxu0 0.0
    %326 = vmatpush1.msra.mxu0 0.0
    %327 = vmatprep.subr.mxu0 0.0
    %328 = vmatpush1.msra.mxu0 0.0
    %329 = vmatprep.subr.mxu0 0.0
    %330 = vmatpush1.msra.mxu0 0.0
    %331 = vmatprep.subr.mxu0 0.0
    %332 = vmatpush1.msra.mxu0 0.0
    %333 = vmatprep.subr.mxu0 0.0
    %334 = vmatpush1.msra.mxu0 0.0
    %335 = vmatprep.subr.mxu0 0.0
    %336 = vmatpush1.msra.mxu0 0.0
    %337 = vmatprep.subr.mxu0 0.0
    %338 = vmatpush1.msra.mxu0 0.0
    %339 = vmatprep.subr.mxu0 0.0
    %340 = vmatpush1.msra.mxu0 0.0
    %341 = vmatprep.subr.mxu0 0.0
    %342 = vmatpush1.msra.mxu0 0.0
    %343 = vmatprep.subr.mxu0 0.0
    %344 = vmatpush1.msra.mxu0 0.0
    %345 = vmatprep.subr.mxu0 0.0
    %346 = vmatpush1.msra.mxu0 0.0
    %347 = vmatprep.subr.mxu0 0.0
    %348 = vmatpush1.msra.mxu0 %v309
    %349 = vmatprep.subr.mxu0 0.0
    %350 = vmatpush1.msra.mxu0 %v308
    %351 = vmatprep.subr.mxu0 0.0
    %352 = vmatpush1.msra.mxu0 %v307
    %353 = vmatprep.subr.mxu0 0.0
    %354 = vmatpush1.msra.mxu0 %v306
    %355 = vmatprep.subr.mxu0 0.0
    %356 = vmatpush2.msra.mxu0 0.0
    %357 = vmatprep.subr.mxu0 0.0
    %358 = vmatpush2.msra.mxu0 0.0
    %359 = vmatprep.subr.mxu0 0.0
    %360 = vmatpush2.msra.mxu0 0.0
    %361 = vmatprep.subr.mxu0 0.0
    %362 = vmatpush2.msra.mxu0 0.0
    %363 = vmatprep.subr.mxu0 0.0
    %364 = vmatpush2.msra.mxu0 0.0
    %365 = vmatprep.subr.mxu0 0.0
    %366 = vmatpush2.msra.mxu0 0.0
    %367 = vmatprep.subr.mxu0 0.0
    %368 = vmatpush2.msra.mxu0 0.0
    %369 = vmatprep.subr.mxu0 0.0
    %370 = vmatpush2.msra.mxu0 0.0
    %371 = vmatprep.subr.mxu0 0.0
    %372 = vmatpush2.msra.mxu0 0.0
    %373 = vmatprep.subr.mxu0 0.0
    %374 = vmatpush2.msra.mxu0 0.0
    %375 = vmatprep.subr.mxu0 0.0
    %376 = vmatpush2.msra.mxu0 0.0
    %377 = vmatprep.subr.mxu0 0.0
    %378 = vmatpush2.msra.mxu0 0.0
    %379 = vmatprep.subr.mxu0 0.0
    %380 = vmatpush2.msra.mxu0 0.0
    %381 = vmatprep.subr.mxu0 0.0
    %382 = vmatpush2.msra.mxu0 0.0
    %383 = vmatprep.subr.mxu0 0.0
    %384 = vmatpush2.msra.mxu0 0.0
    %385 = vmatprep.subr.mxu0 0.0
    %386 = vmatpush2.msra.mxu0 0.0
    %387 = vmatprep.mubr.f32.mxu0 0.0
    %388 = vmatmul.mubr.f32.gmra.mxu0 %v312
    %v389 = vpop.f32.mrf.mxu0
    %v390 = vadd.f32 0.0, %v389
    %v391 = vpop.f32.mrf.mxu0
    %392 = vmatprep.mubr.f32.mxu0 0.0
    %393 = vmatmul.mubr.f32.gmra.mxu0 %v315
    %v394 = vpop.f32.mrf.mxu0
    %v395 = vadd.f32 0.0, %v394
    %v396 = vpop.f32.mrf.mxu0
    %397 = vmatprep.mubr.f32.mxu0 0.0
    %398 = vmatmul.mubr.f32.gmra.mxu0 %v318
    %v399 = vpop.f32.mrf.mxu0
    %v400 = vadd.f32 0.0, %v399
    %v401 = vpop.f32.mrf.mxu0
    %402 = vmatprep.mubr.f32.mxu0 0.0
    %403 = vmatmul.mubr.f32.gmra.mxu0 %v321
    %v404 = vpop.f32.mrf.mxu0
    %v405 = vadd.f32 0.0, %v404
    %v406 = vpop.f32.mrf.mxu0
    %407 = vdwg.mxu0
    %v408 = vld [vmem:[%s5] sm:$0x1]
    %v410 = vlaneseq
    %v411 = vshrl.u32 %v410, 7
    %v412 = vsub.s32 0, %v411
    %v413 = vrot.slane %v408, %v412
    %415 = vmatprep.subr.mxu0 0.0
    %416 = vmatpush1.msra.mxu0 0.0
    %417 = vmatprep.subr.mxu0 0.0
    %418 = vmatpush1.msra.mxu0 0.0
    %419 = vmatprep.subr.mxu0 0.0
    %420 = vmatpush1.msra.mxu0 0.0
    %421 = vmatprep.subr.mxu0 0.0
    %422 = vmatpush1.msra.mxu0 0.0
    %423 = vmatprep.subr.mxu0 0.0
    %424 = vmatpush1.msra.mxu0 0.0
    %425 = vmatprep.subr.mxu0 0.0
    %426 = vmatpush1.msra.mxu0 0.0
    %427 = vmatprep.subr.mxu0 0.0
    %428 = vmatpush1.msra.mxu0 0.0
    %429 = vmatprep.subr.mxu0 0.0
    %430 = vmatpush1.msra.mxu0 0.0
    %431 = vmatprep.subr.mxu0 0.0
    %432 = vmatpush1.msra.mxu0 0.0
    %433 = vmatprep.subr.mxu0 0.0
    %434 = vmatpush1.msra.mxu0 0.0
    %435 = vmatprep.subr.mxu0 0.0
    %436 = vmatpush1.msra.mxu0 0.0
    %437 = vmatprep.subr.mxu0 0.0
    %438 = vmatpush1.msra.mxu0 0.0
    %439 = vmatprep.subr.mxu0 0.0
    %440 = vmatpush1.msra.mxu0 0.0
    %441 = vmatprep.subr.mxu0 0.0
    %442 = vmatpush1.msra.mxu0 0.0
    %443 = vmatprep.subr.mxu0 0.0
    %444 = vmatpush1.msra.mxu0 %v395
    %445 = vmatprep.subr.mxu0 0.0
    %446 = vmatpush1.msra.mxu0 %v390
    %447 = vmatprep.subr.mxu0 0.0
    %448 = vmatpush2.msra.mxu0 0.0
    %449 = vmatprep.subr.mxu0 0.0
    %450 = vmatpush2.msra.mxu0 0.0
    %451 = vmatprep.subr.mxu0 0.0
    %452 = vmatpush2.msra.mxu0 0.0
    %453 = vmatprep.subr.mxu0 0.0
    %454 = vmatpush2.msra.mxu0 0.0
    %455 = vmatprep.subr.mxu0 0.0
    %456 = vmatpush2.msra.mxu0 0.0
    %457 = vmatprep.subr.mxu0 0.0
    %458 = vmatpush2.msra.mxu0 0.0
    %459 = vmatprep.subr.mxu0 0.0
    %460 = vmatpush2.msra.mxu0 0.0
    %461 = vmatprep.subr.mxu0 0.0
    %462 = vmatpush2.msra.mxu0 0.0
    %463 = vmatprep.subr.mxu0 0.0
    %464 = vmatpush2.msra.mxu0 0.0
    %465 = vmatprep.subr.mxu0 0.0
    %466 = vmatpush2.msra.mxu0 0.0
    %467 = vmatprep.subr.mxu0 0.0
    %468 = vmatpush2.msra.mxu0 0.0
    %469 = vmatprep.subr.mxu0 0.0
    %470 = vmatpush2.msra.mxu0 0.0
    %471 = vmatprep.subr.mxu0 0.0
    %472 = vmatpush2.msra.mxu0 0.0
    %473 = vmatprep.subr.mxu0 0.0
    %474 = vmatpush2.msra.mxu0 0.0
    %475 = vmatprep.subr.mxu0 0.0
    %476 = vmatpush2.msra.mxu0 0.0
    %477 = vmatprep.subr.mxu0 0.0
    %478 = vmatpush2.msra.mxu0 0.0
    %479 = vmatprep.mubr.f32.mxu0 0.0
    %480 = vmatmul.mubr.f32.gmra.mxu0 %v30
    %v481 = vpop.f32.mrf.mxu0
    %v482 = vadd.f32 %v413, %v481
    %v483 = vpop.f32.mrf.mxu0
    %484 = vmatprep.mubr.f32.mxu0 0.0
    %485 = vmatmul.mubr.f32.gmra.mxu0 %v33
    %v486 = vpop.f32.mrf.mxu0
    %v487 = vadd.f32 %v413, %v486
    %v488 = vpop.f32.mrf.mxu0
    %489 = vdwg.mxu0
    %vm490 = vcmp.gt.f32.partialorder %v482, 0.0
    %vm491 = vcmp.gt.f32.partialorder %v487, 0.0
    %v492 = vmul.f32 %v482, 0.01
    %v493 = vmul.f32 %v487, 0.01
    %v494 = vsel %vm490, %v482, %v492
    %v495 = vsel %vm491, %v487, %v493
    %496 = vst.msk [vmem:[#allocation2] sm:$0xff] %vm28, %v494
    %497 = vst.msk [vmem:[#allocation2 + $0x8] sm:$0xff] %vm28, %v495
    %v498 = vld [vmem:[%s5] sm:$0x1]
    %v500 = vlaneseq
    %v501 = vshrl.u32 %v500, 7
    %v502 = vsub.s32 0, %v501
    %v503 = vrot.slane %v498, %v502
    %505 = vmatprep.subr.mxu0 0.0
    %506 = vmatpush1.msra.mxu0 0.0
    %507 = vmatprep.subr.mxu0 0.0
    %508 = vmatpush1.msra.mxu0 0.0
    %509 = vmatprep.subr.mxu0 0.0
    %510 = vmatpush1.msra.mxu0 0.0
    %511 = vmatprep.subr.mxu0 0.0
    %512 = vmatpush1.msra.mxu0 0.0
    %513 = vmatprep.subr.mxu0 0.0
    %514 = vmatpush1.msra.mxu0 0.0
    %515 = vmatprep.subr.mxu0 0.0
    %516 = vmatpush1.msra.mxu0 0.0
    %517 = vmatprep.subr.mxu0 0.0
    %518 = vmatpush1.msra.mxu0 0.0
    %519 = vmatprep.subr.mxu0 0.0
    %520 = vmatpush1.msra.mxu0 0.0
    %521 = vmatprep.subr.mxu0 0.0
    %522 = vmatpush1.msra.mxu0 0.0
    %523 = vmatprep.subr.mxu0 0.0
    %524 = vmatpush1.msra.mxu0 0.0
    %525 = vmatprep.subr.mxu0 0.0
    %526 = vmatpush1.msra.mxu0 0.0
    %527 = vmatprep.subr.mxu0 0.0
    %528 = vmatpush1.msra.mxu0 0.0
    %529 = vmatprep.subr.mxu0 0.0
    %530 = vmatpush1.msra.mxu0 0.0
    %531 = vmatprep.subr.mxu0 0.0
    %532 = vmatpush1.msra.mxu0 0.0
    %533 = vmatprep.subr.mxu0 0.0
    %534 = vmatpush1.msra.mxu0 %v405
    %535 = vmatprep.subr.mxu0 0.0
    %536 = vmatpush1.msra.mxu0 %v400
    %537 = vmatprep.subr.mxu0 0.0
    %538 = vmatpush2.msra.mxu0 0.0
    %539 = vmatprep.subr.mxu0 0.0
    %540 = vmatpush2.msra.mxu0 0.0
    %541 = vmatprep.subr.mxu0 0.0
    %542 = vmatpush2.msra.mxu0 0.0
    %543 = vmatprep.subr.mxu0 0.0
    %544 = vmatpush2.msra.mxu0 0.0
    %545 = vmatprep.subr.mxu0 0.0
    %546 = vmatpush2.msra.mxu0 0.0
    %547 = vmatprep.subr.mxu0 0.0
    %548 = vmatpush2.msra.mxu0 0.0
    %549 = vmatprep.subr.mxu0 0.0
    %550 = vmatpush2.msra.mxu0 0.0
    %551 = vmatprep.subr.mxu0 0.0
    %552 = vmatpush2.msra.mxu0 0.0
    %553 = vmatprep.subr.mxu0 0.0
    %554 = vmatpush2.msra.mxu0 0.0
    %555 = vmatprep.subr.mxu0 0.0
    %556 = vmatpush2.msra.mxu0 0.0
    %557 = vmatprep.subr.mxu0 0.0
    %558 = vmatpush2.msra.mxu0 0.0
    %559 = vmatprep.subr.mxu0 0.0
    %560 = vmatpush2.msra.mxu0 0.0
    %561 = vmatprep.subr.mxu0 0.0
    %562 = vmatpush2.msra.mxu0 0.0
    %563 = vmatprep.subr.mxu0 0.0
    %564 = vmatpush2.msra.mxu0 0.0
    %565 = vmatprep.subr.mxu0 0.0
    %566 = vmatpush2.msra.mxu0 0.0
    %567 = vmatprep.subr.mxu0 0.0
    %568 = vmatpush2.msra.mxu0 0.0
    %569 = vmatprep.mubr.f32.mxu0 0.0
    %570 = vmatmul.mubr.f32.gmra.mxu0 %v30
    %v571 = vpop.f32.mrf.mxu0
    %v572 = vadd.f32 %v503, %v571
    %v573 = vpop.f32.mrf.mxu0
    %574 = vmatprep.mubr.f32.mxu0 0.0
    %575 = vmatmul.mubr.f32.gmra.mxu0 %v33
    %v576 = vpop.f32.mrf.mxu0
    %v577 = vadd.f32 %v503, %v576
    %v578 = vpop.f32.mrf.mxu0
    %579 = vdwg.mxu0
    %vm580 = vcmp.gt.f32.partialorder %v572, 0.0
    %vm581 = vcmp.gt.f32.partialorder %v577, 0.0
    %v582 = vmul.f32 %v572, 0.01
    %v583 = vmul.f32 %v577, 0.01
    %v584 = vsel %vm580, %v572, %v582
    %v585 = vsel %vm581, %v577, %v583
    %s586 = scalar_lea.vmem [#allocation2], 16
    %587 = vst.msk [vmem:[%s586] sm:$0xff] %vm28, %v584
    %588 = vst.msk [vmem:[%s586 + $0x8] sm:$0xff] %vm28, %v585
    // Predicated region
    $region26: #{tpu_custom_call.1} parent=1 // pred_check
      _
    $region27: #{tpu_custom_call.1} parent=1 // pred_check_branch
      %590 = sbr.rel (0) target = $region29
    $region28: #{tpu_custom_call.1} parent=1 // pred_region
      %s592 = ssub.s32 512, 512
      %593 = vsyncadd [#allocation3], %s592
      %s594 = sshll.u32 [#allocation2], 4
      %s595 = int_to_ptr.vmem [resolvable:$true] %s594
      %600 = dma.vmem_to_hbm [thread:$0]  %s595, 512, %s6, [#allocation3], 128, 128, 8
    $region29: #{tpu_custom_call.1} parent=1 // pred_fallthru
      _
    // Predicated region
    $region30: #{tpu_custom_call.1} parent=1 // pred_check
      _
    $region31: #{tpu_custom_call.1} parent=1 // pred_check_branch
      %602 = sbr.rel (0) target = $region33
    $region32: #{tpu_custom_call.1} parent=1 // pred_region
      %603 = dma.done [#allocation3], 512
    $region33: #{tpu_custom_call.1} parent=1 // pred_fallthru
      _
    %604 = vsyncpa [#allocation3], 1

</llo_original>
